<compile_context>
chip_gen: v6e
topology: v6e:2x2x1
jax: 0.10.0
libtpu: 0.0.40
codegen_flags: <defaults>
</compile_context>

<pallas_src>
import functools

import numpy as np
import jax
import jax.numpy as jnp
from jax.experimental import pallas as pl
from jax.experimental.pallas import tpu as pltpu

# ---- criterion / matcher hyper-parameters (deterministic, from __init__) ----
ALPHA = 0.25
GAMMA = 2.0
EPS = 1e-8
COST_CLASS = 2.0   # matcher weights
COST_BBOX = 5.0
COST_GIOU = 2.0
WEIGHT_DICT = {"loss_class": 2.0, "loss_bbox": 5.0, "loss_giou": 2.0}

QT_LANES_MAX = 8192                 # max query lanes per grid step
VMEM_LIMIT = 32 * 1024 * 1024       # explicit scoped-VMEM budget (safe on v5e/v6e/v7x)


def _round_up(x, m):
    return ((x + m - 1) // m) * m


def _pow_gamma(x):
    # gamma == 2.0 -> keep it on the VPU (avoids exp/log edge cases)
    return x * x if GAMMA == 2.0 else jnp.power(x, GAMMA)


def _fast_recip(x):
    # EUP approximate reciprocal + one VPU Newton step; only used where x in (1, 2]
    r = pl.reciprocal(x, approx=True)
    return r * (2.0 - x * r)


def _query_tiling(Q, Cp):
    """Shared query-axis tiling for both kernels.

    Returns (n_chunks, steps, qt, Qp):
      n_chunks : parallel query chunks (second parallel grid axis, dual-TC on v7x)
      steps    : reduction steps per chunk (focal kernel)
      qt       : lanes per grid step (multiple of 128)
      Qp       : padded query extent = n_chunks * steps * qt
    """
    q128 = _round_up(max(Q, 1), 128)
    n_tiles = q128 // 128
    n_chunks = 2 if n_tiles >= 2 else 1
    # cap per-step lane width so each [Cp, qt] f32 temporary stays around <= 2 MiB
    bytes_cap_lanes = max(128, ((2 * 1024 * 1024) // (4 * Cp)) // 128 * 128)
    max_step_tiles = max(1, min(QT_LANES_MAX, bytes_cap_lanes) // 128)
    step_tiles = max(1, min(-(-n_tiles // n_chunks), max_step_tiles))
    qt = 128 * step_tiles
    steps = -(-n_tiles // (n_chunks * step_tiles))
    Qp = n_chunks * steps * qt
    return n_chunks, steps, qt, Qp


# --------------------------------------------------------------------------
# Kernel 1: matcher cost matrix, lane-dense [Tp, qt] blocks, grid (B, Q-blocks)
# --------------------------------------------------------------------------
def _matcher_cost_kernel(logits_ref, boxes_ref, onehot_ref, seg_ref, cost_ref):
    x = logits_ref[0].astype(jnp.float32)            # [Cp, qt] (queries on lanes)
    # one exp(-|x|) feeds the sigmoid and both focal log terms
    e = jnp.exp(-jnp.abs(x))
    lg = jnp.log1p(e)
    sp_pos = jnp.maximum(x, 0.0) + lg                # softplus(x)  ~= -log(1 - p)
    sp_neg = jnp.maximum(-x, 0.0) + lg               # softplus(-x) ~= -log(p)
    r = _fast_recip(1.0 + e)
    prob = jnp.where(x >= 0.0, r, e * r)             # sigmoid(x)

    neg_cost = (1.0 - ALPHA) * _pow_gamma(prob) * sp_pos
    pos_cost = ALPHA * _pow_gamma(1.0 - prob) * sp_neg
    delta = pos_cost - neg_cost                      # [Cp, qt]

    # class cost: one MXU pass (padded class rows hit zero one-hot columns)
    onehot = onehot_ref[0]                           # [Tp, Cp] f32
    cost_class = jnp.dot(onehot, delta, preferred_element_type=jnp.float32)   # [Tp, qt]

    pb = boxes_ref[0]                                # [2, qt] f32
    gt = seg_ref[0]                                  # [Tp, 2] f32
    pc, pw = pb[0:1, :], pb[1:2, :]                  # [1, qt]
    gc, gw = gt[:, 0:1], gt[:, 1:2]                  # [Tp, 1]

    # L1 cost in (center, width) space
    cost_bbox = jnp.abs(gc - pc) + jnp.abs(gw - pw)  # [Tp, qt]

    # GIoU cost in (start, end) space (exact division in the denominators)
    ps, pe = pc - 0.5 * pw, pc + 0.5 * pw
    gs, ge = gc - 0.5 * gw, gc + 0.5 * gw
    inter = jnp.maximum(jnp.minimum(pe, ge) - jnp.maximum(ps, gs), 0.0)
    union = (pe - ps) + (ge - gs) - inter
    iou = inter / (union + EPS)
    enclose = jnp.maximum(pe, ge) - jnp.minimum(ps, gs)
    giou = iou - (enclose - union) / (enclose + EPS)

    cost_ref[0] = COST_CLASS * cost_class + COST_BBOX * cost_bbox + COST_GIOU * (-giou)


def matcher_costs(logits_t, boxes_t, gt_onehot, gt_seg, qt):
    B, Cp, Qp = logits_t.shape
    Tp = gt_onehot.shape[1]
    nqb = Qp // qt
    return pl.pallas_call(
        _matcher_cost_kernel,
        out_shape=jax.ShapeDtypeStruct((B, Tp, Qp), jnp.float32),
        grid=(B, nqb),
        in_specs=[
            pl.BlockSpec((1, Cp, qt), lambda b, j: (b, 0, j)),
            pl.BlockSpec((1, 2, qt), lambda b, j: (b, 0, j)),
            pl.BlockSpec((1, Tp, Cp), lambda b, j: (b, 0, 0)),
            pl.BlockSpec((1, Tp, 2), lambda b, j: (b, 0, 0)),
        ],
        out_specs=pl.BlockSpec((1, Tp, qt), lambda b, j: (b, 0, j)),
        compiler_params=pltpu.CompilerParams(
            dimension_semantics=("parallel", "parallel"),
            vmem_limit_bytes=VMEM_LIMIT),
    )(logits_t, boxes_t, gt_onehot, gt_seg)


# --------------------------------------------------------------------------
# Kernel 2: sigmoid focal loss, lane-dense [Cp, qt] tiles, VMEM accumulator
# grid (B, chunks, steps); per-(b, chunk) partial sums reduced in the wrapper
# --------------------------------------------------------------------------
def _focal_loss_kernel(logits_ref, idx_ref, out_ref, acc_ref, *, num_classes):
    s = pl.program_id(2)

    @pl.when(s == 0)
    def _():
        acc_ref[...] = jnp.zeros_like(acc_ref)

    x = logits_ref[0].astype(jnp.float32)                 # [Cp, qt]
    idx = idx_ref[0]                                      # [1, qt] int32
    klass = jax.lax.broadcasted_iota(jnp.int32, x.shape, 0)
    t = (klass == idx).astype(jnp.float32)                # in-kernel one-hot target
    # padded class rows (klass >= C) and padded query lanes (idx < 0) contribute 0
    mask = jnp.logical_and(klass < num_classes, idx >= 0).astype(jnp.float32)

    e = jnp.exp(-jnp.abs(x))                              # shared by BCE and sigmoid
    ce = jnp.maximum(x, 0.0) - x * t + jnp.log1p(e)       # stable BCE-with-logits
    r = _fast_recip(1.0 + e)
    p = jnp.where(x >= 0.0, r, e * r)                     # sigmoid(x)
    p_t = p * t + (1.0 - p) * (1.0 - t)
    alpha_t = ALPHA * t + (1.0 - ALPHA) * (1.0 - t)

    # per-tile cost is a full-vreg VPU add; the XLU reduction happens once per chunk
    acc_ref[...] += alpha_t * _pow_gamma(1.0 - p_t) * ce * mask

    @pl.when(s == pl.num_programs(2) - 1)
    def _():
        out_ref[0] = jnp.sum(acc_ref[...], keepdims=True)


def focal_loss_partial_sums(logits_t, tgt_idx, num_classes, n_chunks, steps, qt):
    B, Cp, Qp = logits_t.shape
    kernel = functools.partial(_focal_loss_kernel, num_classes=num_classes)
    return pl.pallas_call(
        kernel,
        out_shape=jax.ShapeDtypeStruct((B * n_chunks, 1, 1), jnp.float32),
        grid=(B, n_chunks, steps),
        in_specs=[
            pl.BlockSpec((1, Cp, qt), lambda b, p, s: (b, 0, p * steps + s)),
            pl.BlockSpec((1, 1, qt), lambda b, p, s: (b, 0, p * steps + s)),
        ],
        out_specs=pl.BlockSpec((1, 1, 1), lambda b, p, s: (b * n_chunks + p, 0, 0)),
        scratch_shapes=[pltpu.VMEM((Cp, qt), jnp.float32)],
        compiler_params=pltpu.CompilerParams(
            dimension_semantics=("parallel", "parallel", "arbitrary"),
            vmem_limit_bytes=VMEM_LIMIT),
    )(logits_t, tgt_idx)


# --------------------------------------------------------------------------
# Matched-box L1 + GIoU sums: tens of boxes -> one small fused jnp computation
# --------------------------------------------------------------------------
def _box_losses_jnp(src_boxes, tgt_boxes):
    l1 = jnp.sum(jnp.abs(src_boxes - tgt_boxes))
    ss, se = src_boxes[:, 0] - 0.5 * src_boxes[:, 1], src_boxes[:, 0] + 0.5 * src_boxes[:, 1]
    ts, te = tgt_boxes[:, 0] - 0.5 * tgt_boxes[:, 1], tgt_boxes[:, 0] + 0.5 * tgt_boxes[:, 1]
    inter = jnp.maximum(jnp.minimum(se, te) - jnp.maximum(ss, ts), 0.0)
    union = (se - ss) + (te - ts) - inter
    iou = inter / (union + EPS)
    enclose = jnp.maximum(se, te) - jnp.minimum(ss, ts)
    giou = iou - (enclose - union) / (enclose + EPS)
    return l1, jnp.sum(1.0 - giou)


# --------------------------------------------------------------------------
# Host-side Hungarian assignment: O(n^2 m) Jonker-Volgenant (numpy)
# --------------------------------------------------------------------------
def linear_sum_assignment_np(cost):
    cost = np.asarray(cost, dtype=np.float64)
    transposed = cost.shape[0] > cost.shape[1]
    if transposed:
        cost = cost.T
    n, m = cost.shape
    INF = float("inf")
    u = [0.0] * (n + 1)
    v = [0.0] * (m + 1)
    p = [0] * (m + 1)
    way = [0] * (m + 1)
    for i in range(1, n + 1):
        p[0] = i
        j0 = 0
        minv = [INF] * (m + 1)
        used = [False] * (m + 1)
        while True:
            used[j0] = True
            i0 = p[j0]
            delta = INF
            j1 = 0
            for j in range(1, m + 1):
                if not used[j]:
                    cur = cost[i0 - 1, j - 1] - u[i0] - v[j]
                    if cur < minv[j]:
                        minv[j] = cur
                        way[j] = j0
                    if minv[j] < delta:
                        delta = minv[j]
                        j1 = j
            for j in range(m + 1):
                if used[j]:
                    u[p[j]] += delta
                    v[j] -= delta
                else:
                    minv[j] -= delta
            j0 = j1
            if p[j0] == 0:
                break
        while True:
            j1 = way[j0]
            p[j0] = p[j1]
            j0 = j1
            if j0 == 0:
                break
    rows, cols = [], []
    for j in range(1, m + 1):
        if p[j] != 0:
            rows.append(p[j] - 1)
            cols.append(j - 1)
    rows = np.asarray(rows, dtype=np.int64)
    cols = np.asarray(cols, dtype=np.int64)
    if transposed:
        rows, cols = cols, rows
    order = np.argsort(rows)
    return rows[order], cols[order]


# --------------------------------------------------------------------------
# SetCriterion forward (focal_loss, use_multi_class=True, losses=['class','boxes'])
# --------------------------------------------------------------------------
def set_criterion_forward(pred_logits, pred_boxes, gt_segments_list, gt_labels_list,
                          num_classes):
    B, Q, C = pred_logits.shape
    assert C == num_classes
    n_gt = [int(s.shape[0]) for s in gt_segments_list]
    Tmax = max(max(n_gt), 1)
    Tp = _round_up(Tmax, 8)        # sublane-aligned target axis
    Cp = _round_up(C, 8)           # sublane-aligned class axis
    n_chunks, steps, qt, Qp = _query_tiling(Q, Cp)

    gt_labels_np = [np.asarray(l).astype(np.int64) for l in gt_labels_list]
    gt_segments_np = [np.asarray(s).astype(np.float32).reshape(-1, 2) for s in gt_segments_list]

    # convert_gt_to_one_hot + padding, built once on host with numpy
    gt_onehot_np = np.zeros((B, Tp, Cp), np.float32)
    gt_seg_np = np.zeros((B, Tp, 2), np.float32)
    for b in range(B):
        if n_gt[b]:
            gt_onehot_np[b, np.arange(n_gt[b]), gt_labels_np[b]] = 1.0
            gt_seg_np[b, :n_gt[b]] = gt_segments_np[b]

    # queries-on-lanes, bf16 logits; shared by the matcher and the focal kernel
    logits_t = jnp.pad(jnp.transpose(pred_logits, (0, 2, 1)).astype(jnp.bfloat16),
                       ((0, 0), (0, Cp - C), (0, Qp - Q)))
    boxes_t = jnp.pad(jnp.transpose(pred_boxes, (0, 2, 1)).astype(jnp.float32),
                      ((0, 0), (0, 0), (0, Qp - Q)))

    # 1) matcher cost matrices (Pallas); the only host sync is the Hungarian solver
    cost = matcher_costs(logits_t, boxes_t, jnp.asarray(gt_onehot_np),
                         jnp.asarray(gt_seg_np), qt)
    cost_valid = cost[:, :Tmax, :Q]            # shrink the D->H transfer to what matching reads
    pred_boxes_np = np.asarray(pred_boxes)     # small; pulled once for the host-side box gather
    cost_np = np.asarray(cost_valid)           # blocks on the matcher kernel

    # TODO(synk): Hungarian matching is combinatorial; it stays on host (numpy JV solver).
    indices = []
    for b in range(B):
        if n_gt[b] == 0:
            indices.append((np.zeros((0,), np.int64), np.zeros((0,), np.int64)))
            continue
        rows, cols = linear_sum_assignment_np(cost_np[b, :n_gt[b], :])  # rows=gt, cols=query
        indices.append((cols, rows))                                    # (src query, tgt gt)

    # TODO(synk): dist.all_reduce(num_boxes) is skipped (single-process run).
    num_boxes = float(max(sum(n_gt), 1))

    # 2) classification focal loss (Pallas): reuse logits_t, compact matched-class row
    tgt_idx_np = np.full((B, 1, Qp), -1, np.int32)   # -1 == lane padding (masked)
    tgt_idx_np[:, 0, :Q] = C                          # C == "unmatched" (all-zero target)
    for b, (src, tgt) in enumerate(indices):
        if len(src):
            tgt_idx_np[b, 0, np.asarray(src, np.int64)] = gt_labels_np[b][tgt].astype(np.int32)
    parts = focal_loss_partial_sums(logits_t, jnp.asarray(tgt_idx_np), C, n_chunks, steps, qt)
    loss_class = jnp.sum(parts) / num_boxes          # == sum(all focal elems) / num_boxes

    # 3) box losses: single host numpy gather + one device_put + one fused jnp op
    batch_idx = np.concatenate([np.full(len(src), b, np.int64)
                                for b, (src, _) in enumerate(indices)])
    src_idx = np.concatenate([np.asarray(src, np.int64) for (src, _) in indices])
    tgt_np = np.concatenate([seg[np.asarray(tgt, np.int64)]
                             for seg, (_, tgt) in zip(gt_segments_np, indices)], axis=0)
    n_match = int(src_idx.shape[0])
    if n_match:
        src_np = pred_boxes_np[batch_idx, src_idx].astype(np.float32)     # [N, 2]
        tgt_np = tgt_np.astype(np.float32)
        pair = jnp.asarray(np.stack([src_np, tgt_np], axis=0))            # one H2D copy
        l1_sum, giou_sum = _box_losses_jnp(pair[0], pair[1])
        loss_bbox = l1_sum / num_boxes
        loss_giou = giou_sum / num_boxes
    else:
        src_np = np.zeros((0, 2), np.float32)
        tgt_np = np.zeros((0, 2), np.float32)
        loss_bbox = jnp.zeros((), jnp.float32)
        loss_giou = jnp.zeros((), jnp.float32)

    losses = {"loss_class": loss_class, "loss_bbox": loss_bbox, "loss_giou": loss_giou}
    # weight_dict scaling (substring match, like the reference)
    for k in list(losses.keys()):
        for kk in WEIGHT_DICT:
            if kk in k:
                losses[k] = losses[k] * WEIGHT_DICT[kk]
    aux = (src_np, tgt_np, tgt_idx_np[:, 0, :Q].copy(), num_boxes)
    return losses, indices, cost_np, aux


# --------------------------------------------------------------------------
# pure-JAX / numpy references (for correctness checks only)
# --------------------------------------------------------------------------
def _ref_focal_sum(logits, target_onehot):
    x = logits.astype(jnp.float32)
    t = target_onehot
    p = jax.nn.sigmoid(x)
    ce = jnp.maximum(x, 0.0) - x * t + jnp.log1p(jnp.exp(-jnp.abs(x)))
    p_t = p * t + (1 - p) * (1 - t)
    return jnp.sum((ALPHA * t + (1 - ALPHA) * (1 - t)) * ce * (1 - p_t) ** 2)


def _ref_matcher_cost(logits, boxes, gt_onehot_rows, gt_seg_rows):
    prob = jax.nn.sigmoid(logits.astype(jnp.float32))                # [Q, C]
    neg = (1 - ALPHA) * prob ** 2 * (-jnp.log(1 - prob + EPS))
    pos = ALPHA * (1 - prob) ** 2 * (-jnp.log(prob + EPS))
    cost_class = (pos - neg) @ gt_onehot_rows.T                      # [Q, T]
    pc, pw = boxes[:, 0:1], boxes[:, 1:2]
    gc, gw = gt_seg_rows[:, 0][None, :], gt_seg_rows[:, 1][None, :]
    cost_bbox = jnp.abs(pc - gc) + jnp.abs(pw - gw)
    ps, pe = pc - 0.5 * pw, pc + 0.5 * pw
    gs, ge = gc - 0.5 * gw, gc + 0.5 * gw
    inter = jnp.maximum(jnp.minimum(pe, ge) - jnp.maximum(ps, gs), 0.0)
    union = (pe - ps) + (ge - gs) - inter
    iou = inter / (union + EPS)
    enclose = jnp.maximum(pe, ge) - jnp.minimum(ps, gs)
    giou = iou - (enclose - union) / (enclose + EPS)
    return COST_CLASS * cost_class + COST_BBOX * cost_bbox + COST_GIOU * (-giou)


def _ref_box_np(src, tgt):
    l1 = float(np.sum(np.abs(src - tgt)))
    ss, se = src[:, 0] - 0.5 * src[:, 1], src[:, 0] + 0.5 * src[:, 1]
    ts, te = tgt[:, 0] - 0.5 * tgt[:, 1], tgt[:, 0] + 0.5 * tgt[:, 1]
    inter = np.maximum(np.minimum(se, te) - np.maximum(ss, ts), 0.0)
    union = (se - ss) + (te - ts) - inter
    iou = inter / (union + EPS)
    enclose = np.maximum(se, te) - np.minimum(ss, ts)
    giou = iou - (enclose - union) / (enclose + EPS)
    return l1, float(np.sum(1.0 - giou))


if __name__ == "__main__":
    key = jax.random.PRNGKey(0)
    B, Q, C = 2, 8, 4          # batch, queries, num_classes
    n_gt = [3, 2]              # ground-truth segments per batch element

    k1, k2, k3, k4, k5, k6 = jax.random.split(key, 6)
    pred_logits = jax.random.normal(k1, (B, Q, C), jnp.float32)
    pred_center = jax.random.uniform(k2, (B, Q), minval=0.1, maxval=0.9)
    pred_width = jax.random.uniform(k3, (B, Q), minval=0.05, maxval=0.4)
    pred_boxes = jnp.stack([pred_center, pred_width], axis=-1)   # (center, width)

    gt_segments_list, gt_labels_list = [], []
    kseg = jax.random.split(k4, B)
    klab = jax.random.split(k5, B)
    for b in range(B):
        c = jax.random.uniform(kseg[b], (n_gt[b],), minval=0.15, maxval=0.85)
        w = jax.random.uniform(klab[b], (n_gt[b],), minval=0.05, maxval=0.3)
        gt_segments_list.append(jnp.stack([c, w], axis=-1).astype(jnp.float32))
        gt_labels_list.append(
            jax.random.randint(jax.random.fold_in(k6, b), (n_gt[b],), 0, C))

    losses, indices, cost_np, aux = set_criterion_forward(
        pred_logits, pred_boxes, gt_segments_list, gt_labels_list, num_classes=C)
    losses = {k: jax.block_until_ready(v) for k, v in losses.items()}
    src_np, tgt_np, tgt_idx_q, num_boxes = aux

    # kernels consume bf16 logits; the references use the same rounding
    logits_bf = np.asarray(pred_logits.astype(jnp.bfloat16).astype(jnp.float32))

    # correctness: matcher cost kernel vs plain-JAX reference (valid region only)
    for b in range(B):
        onehot_rows = jax.nn.one_hot(gt_labels_list[b], C, dtype=jnp.float32)
        ref_cost = np.asarray(_ref_matcher_cost(jnp.asarray(logits_bf[b]), pred_boxes[b],
                                                onehot_rows, gt_segments_list[b]))
        np.testing.assert_allclose(cost_np[b, :n_gt[b], :], ref_cost.T[:n_gt[b], :],
                                   rtol=2e-3, atol=1e-3)

    # correctness: focal loss kernel vs plain-JAX reference
    target_onehot = np.zeros((B, Q, C), np.float32)
    bb, qq = np.nonzero(tgt_idx_q < C)
    target_onehot[bb, qq, tgt_idx_q[bb, qq]] = 1.0
    ref_class = np.asarray(_ref_focal_sum(jnp.asarray(logits_bf), jnp.asarray(target_onehot)))
    ref_class = ref_class / num_boxes * WEIGHT_DICT["loss_class"]
    np.testing.assert_allclose(np.asarray(losses["loss_class"]), ref_class,
                               rtol=2e-3, atol=1e-4)

    # correctness: matched-box L1 / GIoU losses vs numpy reference
    ref_l1, ref_g = _ref_box_np(src_np, tgt_np)
    np.testing.assert_allclose(np.asarray(losses["loss_bbox"]),
                               ref_l1 / num_boxes * WEIGHT_DICT["loss_bbox"],
                               rtol=2e-3, atol=1e-4)
    np.testing.assert_allclose(np.asarray(losses["loss_giou"]),
                               ref_g / num_boxes * WEIGHT_DICT["loss_giou"],
                               rtol=2e-3, atol=1e-4)

    print("KERNEL_OK")
</pallas_src>

<mosaic_0001>
module attributes {stable_mosaic.version = 11 : i64} {
  func.func @_matcher_cost_kernel(%arg0: i32, %arg1: i32, %arg2: memref<1x8x128xbf16, #tpu.memory_space<vmem>>, %arg3: memref<1x2x128xf32, #tpu.memory_space<vmem>>, %arg4: memref<1x8x8xf32, #tpu.memory_space<vmem>>, %arg5: memref<1x8x2xf32, #tpu.memory_space<vmem>>, %arg6: memref<1x8x128xf32, #tpu.memory_space<vmem>>) attributes {dimension_semantics = [#tpu.dimension_semantics<parallel>, #tpu.dimension_semantics<parallel>], iteration_bounds = array<i64: 2, 1>, scalar_prefetch = 0 : i64, scratch_operands = 0 : i64, tpu.core_type = #tpu.core_type<tc>, window_params = [{transform_indices = @transform_0, window_bounds = array<i64: 1, 8, 128>}, {transform_indices = @transform_1, window_bounds = array<i64: 1, 2, 128>}, {transform_indices = @transform_2, window_bounds = array<i64: 1, 8, 8>}, {transform_indices = @transform_3, window_bounds = array<i64: 1, 8, 2>}, {transform_indices = @transform_4, window_bounds = array<i64: 1, 8, 128>}]} {
    %c0 = arith.constant 0 : index
    %c0_0 = arith.constant 0 : index
    %c0_1 = arith.constant 0 : index
    %0 = vector.load %arg2[%c0, %c0_0, %c0_1] : memref<1x8x128xbf16, #tpu.memory_space<vmem>>, vector<1x8x128xbf16>
    %1 = vector.shape_cast %0 : vector<1x8x128xbf16> to vector<8x128xbf16>
    %2 = arith.extf %1 : vector<8x128xbf16> to vector<8x128xf32>
    %3 = math.absf %2 : vector<8x128xf32>
    %cst = arith.constant 0.000000e+00 : f32
    %4 = vector.broadcast %cst : f32 to vector<8x128xf32>
    %5 = arith.subf %4, %3 : vector<8x128xf32>
    %6 = math.exp %5 : vector<8x128xf32>
    %7 = math.log1p %6 : vector<8x128xf32>
    %cst_2 = arith.constant 0.000000e+00 : f32
    %8 = vector.broadcast %cst_2 : f32 to vector<8x128xf32>
    %9 = arith.maximumf %2, %8 : vector<8x128xf32>
    %10 = arith.addf %9, %7 : vector<8x128xf32>
    %cst_3 = arith.constant 0.000000e+00 : f32
    %11 = vector.broadcast %cst_3 : f32 to vector<8x128xf32>
    %12 = arith.subf %11, %2 : vector<8x128xf32>
    %cst_4 = arith.constant 0.000000e+00 : f32
    %13 = vector.broadcast %cst_4 : f32 to vector<8x128xf32>
    %14 = arith.maximumf %12, %13 : vector<8x128xf32>
    %15 = arith.addf %14, %7 : vector<8x128xf32>
    %cst_5 = arith.constant 1.000000e+00 : f32
    %16 = vector.broadcast %cst_5 : f32 to vector<8x128xf32>
    %17 = arith.addf %16, %6 : vector<8x128xf32>
    %18 = tpu.reciprocal %17 {approx = true} : vector<8x128xf32> -> vector<8x128xf32>
    %19 = arith.mulf %17, %18 : vector<8x128xf32>
    %cst_6 = arith.constant 2.000000e+00 : f32
    %20 = vector.broadcast %cst_6 : f32 to vector<8x128xf32>
    %21 = arith.subf %20, %19 : vector<8x128xf32>
    %22 = arith.mulf %18, %21 : vector<8x128xf32>
    %cst_7 = arith.constant 0.000000e+00 : f32
    %23 = vector.broadcast %cst_7 : f32 to vector<8x128xf32>
    %24 = arith.cmpf oge, %2, %23 : vector<8x128xf32>
    %25 = arith.mulf %6, %22 : vector<8x128xf32>
    %26 = arith.select %24, %22, %25 : vector<8x128xi1>, vector<8x128xf32>
    %27 = arith.mulf %26, %26 : vector<8x128xf32>
    %cst_8 = arith.constant 7.500000e-01 : f32
    %28 = vector.broadcast %cst_8 : f32 to vector<8x128xf32>
    %29 = arith.mulf %28, %27 : vector<8x128xf32>
    %30 = arith.mulf %29, %10 : vector<8x128xf32>
    %cst_9 = arith.constant 1.000000e+00 : f32
    %31 = vector.broadcast %cst_9 : f32 to vector<8x128xf32>
    %32 = arith.subf %31, %26 : vector<8x128xf32>
    %33 = arith.mulf %32, %32 : vector<8x128xf32>
    %cst_10 = arith.constant 2.500000e-01 : f32
    %34 = vector.broadcast %cst_10 : f32 to vector<8x128xf32>
    %35 = arith.mulf %34, %33 : vector<8x128xf32>
    %36 = arith.mulf %35, %15 : vector<8x128xf32>
    %37 = arith.subf %36, %30 : vector<8x128xf32>
    %c0_11 = arith.constant 0 : index
    %c0_12 = arith.constant 0 : index
    %c0_13 = arith.constant 0 : index
    %38 = vector.load %arg4[%c0_11, %c0_12, %c0_13] : memref<1x8x8xf32, #tpu.memory_space<vmem>>, vector<1x8x8xf32>
    %39 = vector.shape_cast %38 : vector<1x8x8xf32> to vector<8x8xf32>
    %cst_14 = arith.constant dense<0.000000e+00> : vector<8x128xf32>
    %40 = tpu.matmul %39, %37, %cst_14 {dimension_numbers = #tpu.dot_dimension_numbers<[1], [0], [0], [1], [0, 0, 1, 1], [], []>} : vector<8x8xf32>, vector<8x128xf32>, vector<8x128xf32> -> vector<8x128xf32>
    %c0_15 = arith.constant 0 : index
    %c0_16 = arith.constant 0 : index
    %c0_17 = arith.constant 0 : index
    %41 = vector.load %arg3[%c0_15, %c0_16, %c0_17] : memref<1x2x128xf32, #tpu.memory_space<vmem>>, vector<1x2x128xf32>
    %42 = vector.shape_cast %41 : vector<1x2x128xf32> to vector<2x128xf32>
    %c0_18 = arith.constant 0 : index
    %c0_19 = arith.constant 0 : index
    %c0_20 = arith.constant 0 : index
    %43 = vector.load %arg5[%c0_18, %c0_19, %c0_20] : memref<1x8x2xf32, #tpu.memory_space<vmem>>, vector<1x8x2xf32>
    %44 = vector.shape_cast %43 : vector<1x8x2xf32> to vector<8x2xf32>
    %45 = vector.extract_strided_slice %42 {offsets = [0, 0], sizes = [1, 128], strides = [1, 1]} : vector<2x128xf32> to vector<1x128xf32>
    %46 = vector.extract_strided_slice %42 {offsets = [1, 0], sizes = [1, 128], strides = [1, 1]} : vector<2x128xf32> to vector<1x128xf32>
    %47 = vector.extract_strided_slice %44 {offsets = [0, 0], sizes = [8, 1], strides = [1, 1]} : vector<8x2xf32> to vector<8x1xf32>
    %48 = vector.extract_strided_slice %44 {offsets = [0, 1], sizes = [8, 1], strides = [1, 1]} : vector<8x2xf32> to vector<8x1xf32>
    %49 = vector.broadcast %47 : vector<8x1xf32> to vector<8x128xf32>
    %50 = vector.broadcast %45 : vector<1x128xf32> to vector<8x128xf32>
    %51 = arith.subf %49, %50 : vector<8x128xf32>
    %52 = math.absf %51 : vector<8x128xf32>
    %53 = vector.broadcast %48 : vector<8x1xf32> to vector<8x128xf32>
    %54 = vector.broadcast %46 : vector<1x128xf32> to vector<8x128xf32>
    %55 = arith.subf %53, %54 : vector<8x128xf32>
    %56 = math.absf %55 : vector<8x128xf32>
    %57 = arith.addf %52, %56 : vector<8x128xf32>
    %cst_21 = arith.constant 5.000000e-01 : f32
    %58 = vector.broadcast %cst_21 : f32 to vector<1x128xf32>
    %59 = arith.mulf %58, %46 : vector<1x128xf32>
    %60 = arith.subf %45, %59 : vector<1x128xf32>
    %cst_22 = arith.constant 5.000000e-01 : f32
    %61 = vector.broadcast %cst_22 : f32 to vector<1x128xf32>
    %62 = arith.mulf %61, %46 : vector<1x128xf32>
    %63 = arith.addf %45, %62 : vector<1x128xf32>
    %cst_23 = arith.constant 5.000000e-01 : f32
    %64 = vector.broadcast %cst_23 : f32 to vector<8x1xf32>
    %65 = arith.mulf %64, %48 : vector<8x1xf32>
    %66 = arith.subf %47, %65 : vector<8x1xf32>
    %cst_24 = arith.constant 5.000000e-01 : f32
    %67 = vector.broadcast %cst_24 : f32 to vector<8x1xf32>
    %68 = arith.mulf %67, %48 : vector<8x1xf32>
    %69 = arith.addf %47, %68 : vector<8x1xf32>
    %70 = vector.broadcast %63 : vector<1x128xf32> to vector<8x128xf32>
    %71 = vector.broadcast %69 : vector<8x1xf32> to vector<8x128xf32>
    %72 = arith.minimumf %70, %71 : vector<8x128xf32>
    %73 = vector.broadcast %60 : vector<1x128xf32> to vector<8x128xf32>
    %74 = vector.broadcast %66 : vector<8x1xf32> to vector<8x128xf32>
    %75 = arith.maximumf %73, %74 : vector<8x128xf32>
    %76 = arith.subf %72, %75 : vector<8x128xf32>
    %cst_25 = arith.constant 0.000000e+00 : f32
    %77 = vector.broadcast %cst_25 : f32 to vector<8x128xf32>
    %78 = arith.maximumf %76, %77 : vector<8x128xf32>
    %79 = arith.subf %63, %60 : vector<1x128xf32>
    %80 = arith.subf %69, %66 : vector<8x1xf32>
    %81 = vector.broadcast %79 : vector<1x128xf32> to vector<8x128xf32>
    %82 = vector.broadcast %80 : vector<8x1xf32> to vector<8x128xf32>
    %83 = arith.addf %81, %82 : vector<8x128xf32>
    %84 = arith.subf %83, %78 : vector<8x128xf32>
    %cst_26 = arith.constant 9.99999993E-9 : f32
    %85 = vector.broadcast %cst_26 : f32 to vector<8x128xf32>
    %86 = arith.addf %84, %85 : vector<8x128xf32>
    %87 = arith.divf %78, %86 : vector<8x128xf32>
    %88 = vector.broadcast %63 : vector<1x128xf32> to vector<8x128xf32>
    %89 = vector.broadcast %69 : vector<8x1xf32> to vector<8x128xf32>
    %90 = arith.maximumf %88, %89 : vector<8x128xf32>
    %91 = vector.broadcast %60 : vector<1x128xf32> to vector<8x128xf32>
    %92 = vector.broadcast %66 : vector<8x1xf32> to vector<8x128xf32>
    %93 = arith.minimumf %91, %92 : vector<8x128xf32>
    %94 = arith.subf %90, %93 : vector<8x128xf32>
    %95 = arith.subf %94, %84 : vector<8x128xf32>
    %cst_27 = arith.constant 9.99999993E-9 : f32
    %96 = vector.broadcast %cst_27 : f32 to vector<8x128xf32>
    %97 = arith.addf %94, %96 : vector<8x128xf32>
    %98 = arith.divf %95, %97 : vector<8x128xf32>
    %99 = arith.subf %87, %98 : vector<8x128xf32>
    %cst_28 = arith.constant 2.000000e+00 : f32
    %100 = vector.broadcast %cst_28 : f32 to vector<8x128xf32>
    %101 = arith.mulf %100, %40 : vector<8x128xf32>
    %cst_29 = arith.constant 5.000000e+00 : f32
    %102 = vector.broadcast %cst_29 : f32 to vector<8x128xf32>
    %103 = arith.mulf %102, %57 : vector<8x128xf32>
    %104 = arith.addf %101, %103 : vector<8x128xf32>
    %cst_30 = arith.constant 0.000000e+00 : f32
    %105 = vector.broadcast %cst_30 : f32 to vector<8x128xf32>
    %106 = arith.subf %105, %99 : vector<8x128xf32>
    %cst_31 = arith.constant 2.000000e+00 : f32
    %107 = vector.broadcast %cst_31 : f32 to vector<8x128xf32>
    %108 = arith.mulf %107, %106 : vector<8x128xf32>
    %109 = arith.addf %104, %108 : vector<8x128xf32>
    %c0_32 = arith.constant 0 : index
    %c0_33 = arith.constant 0 : index
    %c0_34 = arith.constant 0 : index
    %110 = vector.load %arg6[%c0_32, %c0_33, %c0_34] : memref<1x8x128xf32, #tpu.memory_space<vmem>>, vector<1x8x128xf32>
    %111 = vector.shape_cast %110 : vector<1x8x128xf32> to vector<8x128xf32>
    %112 = vector.shape_cast %109 : vector<8x128xf32> to vector<1x8x128xf32>
    tpu.vector_store %arg6[%c0_32, %c0_33, %c0_34], %112 {strides = array<i32>} : memref<1x8x128xf32, #tpu.memory_space<vmem>>, vector<1x8x128xf32>,
    return
  }
  func.func @transform_0(%arg0: i32, %arg1: i32) -> (i32, i32, i32) {
    %c0_i32 = arith.constant 0 : i32
    %c0_i32_0 = arith.constant 0 : i32
    return %arg0, %c0_i32, %arg1 : i32, i32, i32
  }
  func.func @transform_1(%arg0: i32, %arg1: i32) -> (i32, i32, i32) {
    %c0_i32 = arith.constant 0 : i32
    %c0_i32_0 = arith.constant 0 : i32
    return %arg0, %c0_i32, %arg1 : i32, i32, i32
  }
  func.func @transform_2(%arg0: i32, %arg1: i32) -> (i32, i32, i32) {
    %c0_i32 = arith.constant 0 : i32
    %c0_i32_0 = arith.constant 0 : i32
    %c0_i32_1 = arith.constant 0 : i32
    return %arg0, %c0_i32, %c0_i32_0 : i32, i32, i32
  }
  func.func @transform_3(%arg0: i32, %arg1: i32) -> (i32, i32, i32) {
    %c0_i32 = arith.constant 0 : i32
    %c0_i32_0 = arith.constant 0 : i32
    %c0_i32_1 = arith.constant 0 : i32
    return %arg0, %c0_i32, %c0_i32_0 : i32, i32, i32
  }
  func.func @transform_4(%arg0: i32, %arg1: i32) -> (i32, i32, i32) {
    %c0_i32 = arith.constant 0 : i32
    %c0_i32_0 = arith.constant 0 : i32
    return %arg0, %c0_i32, %arg1 : i32, i32, i32
  }
}

</mosaic_0001>

<llo_original>
// kernel: tpu_custom_call.1
$region0: #{tpu_custom_call.1}
  #allocation0 [shape = 'u32[]', space=smem, size = 0x4, offset = 0x4, fixed_abs, tag = 'smem constant byte address 0x4 - core index']
  #allocation1 [shape = 'u32[144,128]{1,0:T(1,128)}', space=vmem, size = 0x12000, scoped, tag = 'internal scratch']
  %s0 = inlined_call_operand.hbm [shape: bf16[2,8,128], index: 0, kind: input, shape index: {}]
  %s1 = inlined_call_operand.vmem [shape: f32[2,2,128], index: 1, kind: input, shape index: {}]
  %s2 = inlined_call_operand.vmem [shape: f32[2,8,8], index: 2, kind: input, shape index: {}]
  %s3 = inlined_call_operand.vmem [shape: f32[2,8,2], index: 3, kind: input, shape index: {}]
  %s4 = inlined_call_operand.hbm [shape: f32[2,8,128], index: 4, kind: output, shape index: {}]
  %s5 = sld [smem:[#allocation0]]
  $region53: #{tpu_custom_call.1} parent=0
    _
  %s7 = ssub.s32 1, %s5
  %s8 = scalar_select 0, %s7, %s5
  $region1: #{tpu_custom_call.1} parent=0
    #allocation2 [shape = 'u8[4096]{0}', space=vmem, size = 0x1000, scoped, tag = 'input window, operand 0']
    #allocation3 [shape = 's32[2]{0}', space=sflag, size = 0x8, scoped, tag = 'scoped memory for tpu_custom_call.1']
    #allocation4 [shape = 's32[2]{0}', space=sflag, size = 0x8, scoped, tag = 'scoped memory for tpu_custom_call.1']
    #allocation5 [shape = 'u8[8192]{0}', space=vmem, size = 0x2000, scoped, tag = 'output window, operand 0']
    %9 = vsyncpa [#allocation3], 0
    %s10 = scalar_lea.sflag [#allocation3], 1
    %11 = vsyncpa %s10, 0
    %12 = vsyncpa [#allocation4], 0
    %s13 = scalar_lea.sflag [#allocation4], 1
    %14 = vsyncpa %s13, 0
    loop: start=0, step=1, limit=4
    $region2: #{tpu_custom_call.1} parent=1 // loop_pre_header
      _
    $region3: #{tpu_custom_call.1} parent=1 // loop_header
      %s16 = sphi 0, %s20
      %p17 = scmp.ge.s32.totalorder %s16, 4
      %s23 = sphi 0, %s35
      %s24 = sphi 0, %s31
      %s25 = sphi 0, %s23
      %s26 = sphi 0, %s24
      %s27 = sphi 0, %s25
      %s28 = sphi 0, %s26
      %s40 = sphi 0, %s42
      %s43 = sphi 0, %s40
      %s44 = sphi 0, %s43
      %s60 = sphi 0, %s44
      %s68 = sphi 0, %s70
      %s71 = sphi 0, %s68
      %s72 = sphi 0, %s71
      %s88 = sphi 0, %s72
      %s94 = sphi 0, %s96
      %s97 = sphi 0, %s94
      %s98 = sphi 0, %s97
      %s114 = sphi 0, %s98
      %s120 = sphi 0, %s122
      %s123 = sphi 0, %s120
      %s124 = sphi 0, %s123
      %s140 = sphi 0, %s124
      %s148 = sphi 0, %s150
      %s151 = sphi 0, %s148
      %s152 = sphi 0, %s151
      %s168 = sphi 0, %s152
    $region4: #{tpu_custom_call.1} parent=1 // loop_header_branch
      %19 = sbr.rel (%p17) target = $region8
    $region5: #{tpu_custom_call.1} parent=1 // loop_body
      %s21 = ssub.s32 %s16, 1
      %s22 = ssub.s32 %s16, 2
      %s29 = sadd.s32 1, %s24
      %p30 = scmp.ge.s32.totalorder %s29, 1
      %s31 = scalar_select %p30, 0, %s29
      %s32 = sadd.s32 1, %s23
      %s33 = scalar_select %p30, %s32, %s23
      %p34 = scmp.ge.s32.totalorder %s33, 2
      %s35 = scalar_select %p34, 0, %s33
      %s36 = ssub.s32 %s23, %s35
      %s37 = ssub.s32 %s24, %s31
      %s38 = sor.u32 %s36, %s37
      %p39 = scmp.eq.s32.totalorder %s38, 0
      %s41 = sadd.s32 %s40, 1
      %s42 = scalar_select %p39, %s40, %s41
      %p45 = pneg %p39
      %p46 = scmp.eq.s32.totalorder %s16, 1
      %p47 = por %p45, %p46
      %p48 = scmp.ne.s32.totalorder %s40, %s43
      %p49 = scmp.eq.s32.totalorder %s16, 0
      %p50 = por %p48, %p49
      %p51 = scmp.ne.s32.totalorder %s40, %s43
      %p52 = scmp.eq.s32.totalorder %s21, 1
      %p53 = por %p51, %p52
      %p54 = scmp.ne.s32.totalorder %s43, %s44
      %p55 = scmp.eq.s32.totalorder %s21, 0
      %p56 = por %p54, %p55
      %p57 = scmp.ne.s32.totalorder %s43, %s44
      %p58 = scmp.eq.s32.totalorder %s22, 1
      %p59 = por %p57, %p58
      %p61 = scmp.ne.s32.totalorder %s44, %s60
      %p62 = scmp.eq.s32.totalorder %s22, 0
      %p63 = por %p61, %p62
      %s64 = ssub.s32 %s23, %s35
      %s65 = ssub.s32 %s24, %s31
      %s66 = sor.u32 %s64, %s65
      %p67 = scmp.eq.s32.totalorder %s66, 0
      %s69 = sadd.s32 %s68, 1
      %s70 = scalar_select %p67, %s68, %s69
      %p73 = pneg %p67
      %p74 = scmp.eq.s32.totalorder %s16, 1
      %p75 = por %p73, %p74
      %p76 = scmp.ne.s32.totalorder %s68, %s71
      %p77 = scmp.eq.s32.totalorder %s16, 0
      %p78 = por %p76, %p77
      %p79 = scmp.ne.s32.totalorder %s68, %s71
      %p80 = scmp.eq.s32.totalorder %s21, 1
      %p81 = por %p79, %p80
      %p82 = scmp.ne.s32.totalorder %s71, %s72
      %p83 = scmp.eq.s32.totalorder %s21, 0
      %p84 = por %p82, %p83
      %p85 = scmp.ne.s32.totalorder %s71, %s72
      %p86 = scmp.eq.s32.totalorder %s22, 1
      %p87 = por %p85, %p86
      %p89 = scmp.ne.s32.totalorder %s72, %s88
      %p90 = scmp.eq.s32.totalorder %s22, 0
      %p91 = por %p89, %p90
      %s92 = ssub.s32 %s23, %s35
      %p93 = scmp.eq.s32.totalorder %s92, 0
      %s95 = sadd.s32 %s94, 1
      %s96 = scalar_select %p93, %s94, %s95
      %p99 = pneg %p93
      %p100 = scmp.eq.s32.totalorder %s16, 1
      %p101 = por %p99, %p100
      %p102 = scmp.ne.s32.totalorder %s94, %s97
      %p103 = scmp.eq.s32.totalorder %s16, 0
      %p104 = por %p102, %p103
      %p105 = scmp.ne.s32.totalorder %s94, %s97
      %p106 = scmp.eq.s32.totalorder %s21, 1
      %p107 = por %p105, %p106
      %p108 = scmp.ne.s32.totalorder %s97, %s98
      %p109 = scmp.eq.s32.totalorder %s21, 0
      %p110 = por %p108, %p109
      %p111 = scmp.ne.s32.totalorder %s97, %s98
      %p112 = scmp.eq.s32.totalorder %s22, 1
      %p113 = por %p111, %p112
      %p115 = scmp.ne.s32.totalorder %s98, %s114
      %p116 = scmp.eq.s32.totalorder %s22, 0
      %p117 = por %p115, %p116
      %s118 = ssub.s32 %s23, %s35
      %p119 = scmp.eq.s32.totalorder %s118, 0
      %s121 = sadd.s32 %s120, 1
      %s122 = scalar_select %p119, %s120, %s121
      %p125 = pneg %p119
      %p126 = scmp.eq.s32.totalorder %s16, 1
      %p127 = por %p125, %p126
      %p128 = scmp.ne.s32.totalorder %s120, %s123
      %p129 = scmp.eq.s32.totalorder %s16, 0
      %p130 = por %p128, %p129
      %p131 = scmp.ne.s32.totalorder %s120, %s123
      %p132 = scmp.eq.s32.totalorder %s21, 1
      %p133 = por %p131, %p132
      %p134 = scmp.ne.s32.totalorder %s123, %s124
      %p135 = scmp.eq.s32.totalorder %s21, 0
      %p136 = por %p134, %p135
      %p137 = scmp.ne.s32.totalorder %s123, %s124
      %p138 = scmp.eq.s32.totalorder %s22, 1
      %p139 = por %p137, %p138
      %p141 = scmp.ne.s32.totalorder %s124, %s140
      %p142 = scmp.eq.s32.totalorder %s22, 0
      %p143 = por %p141, %p142
      %s144 = ssub.s32 %s23, %s35
      %s145 = ssub.s32 %s24, %s31
      %s146 = sor.u32 %s144, %s145
      %p147 = scmp.eq.s32.totalorder %s146, 0
      %s149 = sadd.s32 %s148, 1
      %s150 = scalar_select %p147, %s148, %s149
      %p153 = pneg %p147
      %p154 = scmp.eq.s32.totalorder %s16, 1
      %p155 = por %p153, %p154
      %p156 = scmp.ne.s32.totalorder %s148, %s151
      %p157 = scmp.eq.s32.totalorder %s16, 0
      %p158 = por %p156, %p157
      %p159 = scmp.ne.s32.totalorder %s148, %s151
      %p160 = scmp.eq.s32.totalorder %s21, 1
      %p161 = por %p159, %p160
      %p162 = scmp.ne.s32.totalorder %s151, %s152
      %p163 = scmp.eq.s32.totalorder %s21, 0
      %p164 = por %p162, %p163
      %p165 = scmp.ne.s32.totalorder %s151, %s152
      %p166 = scmp.eq.s32.totalorder %s22, 1
      %p167 = por %p165, %p166
      %p169 = scmp.ne.s32.totalorder %s152, %s168
      %p170 = scmp.eq.s32.totalorder %s22, 0
      %p171 = por %p169, %p170
      %p172 = scmp.le.s32.totalorder 1, %s16
      %p173 = scmp.lt.s32.totalorder %s16, 3
      %p174 = pnand %p172, %p173
      %p175 = pneg %p174
      // Predicated region
      $region9: #{tpu_custom_call.1} parent=5 // pred_check
        _
      $region10: #{tpu_custom_call.1} parent=5 // pred_check_branch
        %177 = sbr.rel (%p174) target = $region12
      $region11: #{tpu_custom_call.1} parent=5 // pred_region
        %s178 = ssub.s32 %s16, 1
      $region12: #{tpu_custom_call.1} parent=5 // pred_fallthru
        _
      %p179 = scmp.lt.s32.totalorder %s16, 2
      // Predicated region
      $region13: #{tpu_custom_call.1} parent=5 // pred_check
        %p180 = pneg %p179
      $region14: #{tpu_custom_call.1} parent=5 // pred_check_branch
        %182 = sbr.rel (%p180) target = $region16
      $region15: #{tpu_custom_call.1} parent=5 // pred_region
        // Predicated region
        $region17: #{tpu_custom_call.1} parent=15 // pred_check
          %p183 = pneg %p50
        $region18: #{tpu_custom_call.1} parent=15 // pred_check_branch
          %185 = sbr.rel (%p183) target = $region20
        $region19: #{tpu_custom_call.1} parent=15 // pred_region
          %s186 = sand.u32 %s40, 1
          %s187 = scalar_lea.sflag [#allocation3], %s186
          %s188 = sand.u32 %s40, 1
          %s189 = smul.addr %s188, 4
          %s190 = scalar_lea.vmem [#allocation2], %s189
          %s192 = ssub.s32 64, 64
          %193 = vsyncadd %s187, %s192
          %s194 = sadd.s32 %s24, %s23
          %s195 = smul.addr %s194, 64
          %s196 = scalar_lea.hbm %s0, %s195
          %s198 = sshll.u32 %s190, 4
          %s199 = int_to_ptr.vmem [resolvable:$true] %s198
          %201 = dma.hbm_to_vmem [thread:$0]  %s196, 64, %s199, %s187
        $region20: #{tpu_custom_call.1} parent=15 // pred_fallthru
          _
        // Predicated region
        $region21: #{tpu_custom_call.1} parent=15 // pred_check
          %p202 = pneg %p78
        $region22: #{tpu_custom_call.1} parent=15 // pred_check_branch
          %204 = sbr.rel (%p202) target = $region24
        $region23: #{tpu_custom_call.1} parent=15 // pred_region
          %p205 = scmp.lt.s32.totalorder %s23, 1
          %s206 = scalar_select %p205, %s23, 1
          %p207 = scmp.lt.s32.totalorder %s24, 0
          %s208 = scalar_select %p207, %s24, 0
          %s209 = sadd.s32 %s208, %s206
          %s210 = smul.addr %s209, 2
          %s211 = scalar_lea.vmem %s1, %s210
        $region24: #{tpu_custom_call.1} parent=15 // pred_fallthru
          _
        // Predicated region
        $region25: #{tpu_custom_call.1} parent=15 // pred_check
          %p212 = pneg %p104
        $region26: #{tpu_custom_call.1} parent=15 // pred_check_branch
          %214 = sbr.rel (%p212) target = $region28
        $region27: #{tpu_custom_call.1} parent=15 // pred_region
          %p215 = scmp.lt.s32.totalorder %s23, 1
          %s216 = scalar_select %p215, %s23, 1
          %s217 = smul.addr %s216, 8
          %s218 = scalar_lea.vmem %s2, %s217
        $region28: #{tpu_custom_call.1} parent=15 // pred_fallthru
          _
        // Predicated region
        $region29: #{tpu_custom_call.1} parent=15 // pred_check
          %p219 = pneg %p130
        $region30: #{tpu_custom_call.1} parent=15 // pred_check_branch
          %221 = sbr.rel (%p219) target = $region32
        $region31: #{tpu_custom_call.1} parent=15 // pred_region
          %p222 = scmp.lt.s32.totalorder %s23, 1
          %s223 = scalar_select %p222, %s23, 1
          %s224 = smul.addr %s223, 8
          %s225 = scalar_lea.vmem %s3, %s224
        $region32: #{tpu_custom_call.1} parent=15 // pred_fallthru
          _
      $region16: #{tpu_custom_call.1} parent=5 // pred_fallthru
        _
      %p226 = scmp.le.s32.totalorder 1, %s16
      %p227 = scmp.lt.s32.totalorder %s16, 3
      %p228 = pnand %p226, %p227
      %p229 = pneg %p228
      // Predicated region
      $region33: #{tpu_custom_call.1} parent=5 // pred_check
        _
      $region34: #{tpu_custom_call.1} parent=5 // pred_check_branch
        %231 = sbr.rel (%p228) target = $region36
      $region35: #{tpu_custom_call.1} parent=5 // pred_region
        %s232 = ssub.s32 %s16, 1
        %s233 = sand.u32 %s43, 1
        %s234 = scalar_lea.sflag [#allocation3], %s233
        %s235 = sand.u32 %s43, 1
        %s236 = smul.addr %s235, 4
        %s237 = scalar_lea.vmem [#allocation2], %s236
        // Predicated region
        $region37: #{tpu_custom_call.1} parent=35 // pred_check
          %p238 = pneg %p56
        $region38: #{tpu_custom_call.1} parent=35 // pred_check_branch
          %240 = sbr.rel (%p238) target = $region40
        $region39: #{tpu_custom_call.1} parent=35 // pred_region
          %241 = dma.done %s234, 64
        $region40: #{tpu_custom_call.1} parent=35 // pred_fallthru
          _
        %s242 = sand.u32 %s43, 1
        %s243 = scalar_lea.sflag [#allocation3], %s242
        %s244 = sand.u32 %s43, 1
        %s245 = smul.addr %s244, 4
        %s246 = scalar_lea.vmem [#allocation2], %s245
        %p247 = pneg %p56
        %p248 = pneg %p53
        %p249 = scmp.lt.s32.totalorder %s25, 1
        %s250 = scalar_select %p249, %s25, 1
        %p251 = scmp.lt.s32.totalorder %s26, 0
        %s252 = scalar_select %p251, %s26, 0
        %s253 = sadd.s32 %s252, %s250
        %s254 = smul.addr %s253, 2
        %s255 = scalar_lea.vmem %s1, %s254
        %p256 = pneg %p84
        %p257 = pneg %p81
        %p258 = scmp.lt.s32.totalorder %s25, 1
        %s259 = scalar_select %p258, %s25, 1
        %s260 = smul.addr %s259, 8
        %s261 = scalar_lea.vmem %s2, %s260
        %p262 = pneg %p110
        %p263 = pneg %p107
        %p264 = scmp.lt.s32.totalorder %s25, 1
        %s265 = scalar_select %p264, %s25, 1
        %s266 = smul.addr %s265, 8
        %s267 = scalar_lea.vmem %s3, %s266
        %p268 = pneg %p136
        %p269 = pneg %p133
        %p270 = pneg %p164
        %p271 = pneg %p161
        %s272 = sand.u32 %s151, 1
        %s273 = scalar_lea.sflag [#allocation4], %s272
        %s274 = sand.u32 %s151, 1
        %s275 = smul.addr %s274, 8
        %s276 = scalar_lea.vmem [#allocation5], %s275
        %p277 = scmp.lt.s32.totalorder %s25, 1
        %s278 = scalar_select %p277, %s25, 1
        %p279 = scmp.lt.s32.totalorder %s26, 0
        %s280 = scalar_select %p279, %s26, 0
        %s281 = sadd.s32 %s280, %s278
        %s282 = smul.addr %s281, 2
        %s283 = scalar_lea.vmem %s1, %s282
        %p284 = scmp.lt.s32.totalorder %s25, 1
        %s285 = scalar_select %p284, %s25, 1
        %s286 = smul.addr %s285, 8
        %s287 = scalar_lea.vmem %s2, %s286
        %p288 = scmp.lt.s32.totalorder %s25, 1
        %s289 = scalar_select %p288, %s25, 1
        %s290 = smul.addr %s289, 8
        %s291 = scalar_lea.vmem %s3, %s290
        %v292 = vld [vmem:[%s237] sm:$0xf]
        %v293 = vunpack.c.l.bf16 %v292
        %v294 = vand.u32 2147483647, %v293
        %v295 = vsub.f32 0.0, %v294
        %v296 = vmul.f32 %v295, 1.442695
        %v297 = vpow.pop %v296
        %v298 = vadd.f32 %v297, 1.0
        %v299 = vlog2.pop %v298
        %v300 = vmul.f32 %v299, 0.6931472
        %v301 = vmul.f32 -0.5, %v297
        %v302 = vadd.f32 %v301, 1.0
        %v303 = vmul.f32 %v302, %v297
        %v304 = vand.u32 2147483647, %v297
        %vm305 = vcmp.lt.f32.partialorder %v304, 0.0004427343
        %v306 = vsel %vm305, %v303, %v300
        %v307 = vmax.f32 %v293, 0.0
        %v308 = vadd.f32 %v307, %v306
        %v309 = vsub.f32 0.0, %v293
        %v310 = vmax.f32 %v309, 0.0
        %v311 = vadd.f32 %v310, %v306
        %v312 = vadd.f32 %v297, 1.0
        %v313 = vrcp.pop %v312
        %v314 = vmul.f32 %v312, %v313
        %v315 = vsub.f32 2.0, %v314
        %v316 = vmul.f32 %v313, %v315
        %vm317 = vcmp.ge.f32.partialorder %v293, 0.0
        %v318 = vmul.f32 %v297, %v316
        %v319 = vsel %vm317, %v316, %v318
        %v320 = vmul.f32 %v319, %v319
        %v321 = vmul.f32 %v320, 0.75
        %v322 = vmul.f32 %v321, %v308
        %v323 = vsub.f32 1.0, %v319
        %v324 = vmul.f32 %v323, %v323
        %v325 = vmul.f32 %v324, 0.25
        %v326 = vmul.f32 %v325, %v311
        %v327 = vsub.f32 %v326, %v322
        %v328 = vld [vmem:[%s287] sm:$0xff]
        %vm329 = vcmask 64512
        %v331 = vsel %vm329, %v328, 0
        %333 = vmatprep.subr.mxu0 0.0
        %334 = vmatpush1.msra.mxu0 0.0
        %335 = vmatprep.subr.mxu0 0.0
        %336 = vmatpush1.msra.mxu0 0.0
        %337 = vmatprep.subr.mxu0 0.0
        %338 = vmatpush1.msra.mxu0 0.0
        %339 = vmatprep.subr.mxu0 0.0
        %340 = vmatpush1.msra.mxu0 0.0
        %341 = vmatprep.subr.mxu0 0.0
        %342 = vmatpush1.msra.mxu0 0.0
        %343 = vmatprep.subr.mxu0 0.0
        %344 = vmatpush1.msra.mxu0 0.0
        %345 = vmatprep.subr.mxu0 0.0
        %346 = vmatpush1.msra.mxu0 0.0
        %347 = vmatprep.subr.mxu0 0.0
        %348 = vmatpush1.msra.mxu0 0.0
        %349 = vmatprep.subr.mxu0 0.0
        %350 = vmatpush1.msra.mxu0 0.0
        %351 = vmatprep.subr.mxu0 0.0
        %352 = vmatpush1.msra.mxu0 0.0
        %353 = vmatprep.subr.mxu0 0.0
        %354 = vmatpush1.msra.mxu0 0.0
        %355 = vmatprep.subr.mxu0 0.0
        %356 = vmatpush1.msra.mxu0 0.0
        %357 = vmatprep.subr.mxu0 0.0
        %358 = vmatpush1.msra.mxu0 0.0
        %359 = vmatprep.subr.mxu0 0.0
        %360 = vmatpush1.msra.mxu0 0.0
        %361 = vmatprep.subr.mxu0 0.0
        %362 = vmatpush1.msra.mxu0 0.0
        %363 = vmatprep.subr.mxu0 0.0
        %364 = vmatpush1.msra.mxu0 %v327
        %365 = vmatprep.subr.mxu0 0.0
        %366 = vmatpush2.msra.mxu0 0.0
        %367 = vmatprep.subr.mxu0 0.0
        %368 = vmatpush2.msra.mxu0 0.0
        %369 = vmatprep.subr.mxu0 0.0
        %370 = vmatpush2.msra.mxu0 0.0
        %371 = vmatprep.subr.mxu0 0.0
        %372 = vmatpush2.msra.mxu0 0.0
        %373 = vmatprep.subr.mxu0 0.0
        %374 = vmatpush2.msra.mxu0 0.0
        %375 = vmatprep.subr.mxu0 0.0
        %376 = vmatpush2.msra.mxu0 0.0
        %377 = vmatprep.subr.mxu0 0.0
        %378 = vmatpush2.msra.mxu0 0.0
        %379 = vmatprep.subr.mxu0 0.0
        %380 = vmatpush2.msra.mxu0 0.0
        %381 = vmatprep.subr.mxu0 0.0
        %382 = vmatpush2.msra.mxu0 0.0
        %383 = vmatprep.subr.mxu0 0.0
        %384 = vmatpush2.msra.mxu0 0.0
        %385 = vmatprep.subr.mxu0 0.0
        %386 = vmatpush2.msra.mxu0 0.0
        %387 = vmatprep.subr.mxu0 0.0
        %388 = vmatpush2.msra.mxu0 0.0
        %389 = vmatprep.subr.mxu0 0.0
        %390 = vmatpush2.msra.mxu0 0.0
        %391 = vmatprep.subr.mxu0 0.0
        %392 = vmatpush2.msra.mxu0 0.0
        %393 = vmatprep.subr.mxu0 0.0
        %394 = vmatpush2.msra.mxu0 0.0
        %395 = vmatprep.subr.mxu0 0.0
        %396 = vmatpush2.msra.mxu0 0.0
        %397 = vmatprep.mubr.f32.mxu0 0.0
        %398 = vmatmul.mubr.f32.gmra.mxu0 %v331
        %v399 = vpop.f32.mrf.mxu0
        %v400 = vadd.f32 0.0, %v399
        %v401 = vpop.f32.mrf.mxu0
        %402 = vdwg.mxu0
        %v403 = vld [vmem:[%s283] sm:$0x3]
        %v404 = vld [vmem:[%s291] sm:$0xff]
        %406 = vset.pattern.permute.xlu0 0
        %407 = vperm.xlu0 %406, %v404
        %v408 = vpop.permute.xlu0 %407
        %v410 = vlaneseq
        %v411 = vshrl.u32 %v410, 7
        %v412 = vsub.s32 0, %v411
        %v413 = vrot.slane %v403, %v412
        %v414 = vsub.f32 %v408, %v413
        %v415 = vand.u32 2147483647, %v414
        %416 = vset.pattern.permute.xlu0 1
        %417 = vperm.xlu0 %416, %v404
        %v418 = vpop.permute.xlu0 %417
        %v420 = vlaneseq
        %v421 = vshrl.u32 %v420, 7
        %v422 = vsub.s32 1, %v421
        %v423 = vrot.slane %v403, %v422
        %v424 = vsub.f32 %v418, %v423
        %v425 = vand.u32 2147483647, %v424
        %v426 = vadd.f32 %v415, %v425
        %v427 = vmul.f32 %v403, 0.5
        %v429 = vrot.slane %v427, 1
        %v431 = vsub.f32 %v403, %v429
        %v432 = vadd.f32 %v403, %v429
        %v433 = vmul.f32 %v404, 0.5
        %435 = vrot.lane.b32.xlu0 %v433, 127
        %v436 = vpop.permute.xlu0 %435
        %v438 = vsub.f32 %v404, %v436
        %v439 = vadd.f32 %v404, %v436
        %v440 = vlaneseq
        %v441 = vshrl.u32 %v440, 7
        %v442 = vsub.s32 0, %v441
        %v443 = vrot.slane %v432, %v442
        %445 = vset.pattern.permute.xlu0 0
        %446 = vperm.xlu0 %445, %v439
        %v447 = vpop.permute.xlu0 %446
        %v449 = vmin.f32 %v443, %v447
        %v450 = vlaneseq
        %v451 = vshrl.u32 %v450, 7
        %v452 = vsub.s32 0, %v451
        %v453 = vrot.slane %v431, %v452
        %455 = vset.pattern.permute.xlu0 0
        %456 = vperm.xlu0 %455, %v438
        %v457 = vpop.permute.xlu0 %456
        %v459 = vmax.f32 %v453, %v457
        %v460 = vsub.f32 %v449, %v459
        %v461 = vmax.f32 %v460, 0.0
        %v462 = vsub.f32 %v432, %v431
        %v463 = vsub.f32 %v439, %v438
        %v464 = vlaneseq
        %v465 = vshrl.u32 %v464, 7
        %v466 = vsub.s32 0, %v465
        %v467 = vrot.slane %v462, %v466
        %469 = vset.pattern.permute.xlu0 0
        %470 = vperm.xlu0 %469, %v463
        %v471 = vpop.permute.xlu0 %470
        %v473 = vadd.f32 %v467, %v471
        %v474 = vsub.f32 %v473, %v461
        %v475 = vadd.f32 %v474, 1e-08
        %v476 = vrcp.pop %v475
        %v477 = vmul.f32 %v461, %v476
        %v478 = vmax.f32 %v443, %v447
        %v479 = vmin.f32 %v453, %v457
        %v480 = vsub.f32 %v478, %v479
        %v481 = vsub.f32 %v480, %v474
        %v482 = vadd.f32 %v480, 1e-08
        %v483 = vrcp.pop %v482
        %v484 = vmul.f32 %v481, %v483
        %v485 = vsub.f32 %v477, %v484
        %v486 = vmul.f32 %v400, 2.0
        %v487 = vmul.f32 %v426, 5.0
        %v488 = vadd.f32 %v486, %v487
        %v489 = vsub.f32 0.0, %v485
        %v490 = vmul.f32 %v489, 2.0
        %v491 = vadd.f32 %v488, %v490
        %492 = vst [vmem:[%s276] sm:$0xff] %v491
        %s493 = sand.u32 %s151, 1
        %s494 = scalar_lea.sflag [#allocation4], %s493
        %s495 = sand.u32 %s151, 1
        %s496 = smul.addr %s495, 8
        %s497 = scalar_lea.vmem [#allocation5], %s496
        // Predicated region
        $region41: #{tpu_custom_call.1} parent=35 // pred_check
          %p498 = pneg %p161
        $region42: #{tpu_custom_call.1} parent=35 // pred_check_branch
          %500 = sbr.rel (%p498) target = $region44
        $region43: #{tpu_custom_call.1} parent=35 // pred_region
          %s502 = ssub.s32 128, 128
          %503 = vsyncadd %s494, %s502
          %s504 = sadd.s32 %s26, %s25
          %s505 = smul.addr %s504, 128
          %s506 = scalar_lea.hbm %s4, %s505
          %s508 = sshll.u32 %s497, 4
          %s509 = int_to_ptr.vmem [resolvable:$true] %s508
          %511 = dma.vmem_to_hbm [thread:$0]  %s509, 128, %s506, %s494
        $region44: #{tpu_custom_call.1} parent=35 // pred_fallthru
          _
      $region36: #{tpu_custom_call.1} parent=5 // pred_fallthru
        _
      %p512 = scmp.le.s32.totalorder 2, %s16
      // Predicated region
      $region45: #{tpu_custom_call.1} parent=5 // pred_check
        %p513 = pneg %p512
      $region46: #{tpu_custom_call.1} parent=5 // pred_check_branch
        %515 = sbr.rel (%p513) target = $region48
      $region47: #{tpu_custom_call.1} parent=5 // pred_region
        %s516 = ssub.s32 %s16, 2
        // Predicated region
        $region49: #{tpu_custom_call.1} parent=47 // pred_check
          %p517 = pneg %p167
        $region50: #{tpu_custom_call.1} parent=47 // pred_check_branch
          %519 = sbr.rel (%p517) target = $region52
        $region51: #{tpu_custom_call.1} parent=47 // pred_region
          %s520 = sand.u32 %s152, 1
          %s521 = scalar_lea.sflag [#allocation4], %s520
          %s522 = sand.u32 %s152, 1
          %s523 = smul.addr %s522, 8
          %s524 = scalar_lea.vmem [#allocation5], %s523
          %525 = dma.done %s521, 128
        $region52: #{tpu_custom_call.1} parent=47 // pred_fallthru
          _
      $region48: #{tpu_custom_call.1} parent=5 // pred_fallthru
        _
    $region6: #{tpu_custom_call.1} parent=1 // loop_footer
      %s20 = sadd.s32 1, %s16
    $region7: #{tpu_custom_call.1} parent=1 // loop_footer_branch
      %15 = sbr.rel target = $region3
    $region8: #{tpu_custom_call.1} parent=1 // loop_exit
      _
    %526 = vsyncpa [#allocation3], 1
    %s527 = scalar_lea.sflag [#allocation3], 1
    %528 = vsyncpa %s527, 1
    %529 = vsyncpa [#allocation4], 1
    %s530 = scalar_lea.sflag [#allocation4], 1
    %531 = vsyncpa %s530, 1

</llo_original>
